<compile_context>
chip_gen: v6e
topology: v6e:2x2x1
jax: 0.10.0
libtpu: 0.0.40
codegen_flags: <defaults>
</compile_context>

<pallas_src>
import functools

import jax
import jax.numpy as jnp
from jax.experimental import pallas as pl
from jax.experimental.pallas import tpu as pltpu

_LANE = 128


def _discrete_head_kernel(
    state_ref, dr_ref, dh_ref,
    ws_ref, wc_ref, w1_ref, w2_ref, bh_ref, bo_ref,
    out_ref, *, n_return, n_action,
):
    # ---- state embedding: sigmoid(state @ Ws + bs) -------------------------
    s = jnp.dot(state_ref[...], ws_ref[...], preferred_element_type=jnp.float32)
    s = jax.nn.sigmoid(s + bh_ref[0:1, :])

    # ---- command embedding (scale already folded into Wc at prep time) -----
    # K = n_return + 1 is tiny (2..3), so this is a few VPU FMAs instead of an
    # MXU push; the static Python loop fully unrolls.
    dr = dr_ref[...]                                   # (TB, n_return)
    c_pre = dh_ref[...] * wc_ref[n_return:n_return + 1, :] + bh_ref[1:2, :]
    for k in range(n_return):                          # static unroll
        c_pre = c_pre + dr[:, k:k + 1] * wc_ref[k:k + 1, :]
    c = jax.nn.sigmoid(c_pre)

    # ---- fused trunk: relu((s*c) @ W1 + b1) ---------------------------------
    h = jnp.dot(s * c, w1_ref[...], preferred_element_type=jnp.float32)
    h = jnp.maximum(h + bh_ref[2:3, :], 0.0)

    # ---- output layer + log_softmax over the (padded) action axis ----------
    y = jnp.dot(h, w2_ref[...], preferred_element_type=jnp.float32) + bo_ref[...]
    lane = jax.lax.broadcasted_iota(jnp.int32, y.shape, 1)
    valid = lane < n_action                            # mask the padded lanes
    y_masked = jnp.where(valid, y, -jnp.inf)
    m = jnp.max(y_masked, axis=-1, keepdims=True)
    e = jnp.where(valid, jnp.exp(y - m), 0.0)
    lse = jnp.log(jnp.sum(e, axis=-1, keepdims=True)) + m
    out_ref[...] = jnp.where(valid, y - lse, 0.0)      # lane-dense (TB, AP) store


def prepare_params(params, scaling_factor):
    """One-time param transform: fold the command scale into Wc, zero-pad the
    hidden / action dims to a multiple of 128 lanes (numerically neutral), and
    pack the biases into two small arrays."""
    ws, bs, wc, bc, w1, b1, w2, b2 = params
    n_state, hidden = ws.shape
    n_cmd = wc.shape[0]
    n_action = w2.shape[1]

    HP = max(_LANE, ((hidden + _LANE - 1) // _LANE) * _LANE)
    AP = max(_LANE, ((n_action + _LANE - 1) // _LANE) * _LANE)

    scale = jnp.reshape(scaling_factor, (n_cmd, 1)).astype(jnp.float32)
    wc_scaled = wc * scale                             # diag(scale) @ Wc

    pad2 = lambda w, r, c: jnp.pad(w, ((0, r - w.shape[0]), (0, c - w.shape[1])))
    padb = lambda b, c: jnp.pad(jnp.reshape(b, (1, -1)), ((0, 0), (0, c - b.shape[-1])))

    return dict(
        ws=pad2(ws, n_state, HP),
        wc=pad2(wc_scaled, n_cmd, HP),
        w1=pad2(w1, HP, HP),
        w2=pad2(w2, HP, AP),
        bh=jnp.concatenate([padb(bs, HP), padb(bc, HP), padb(b1, HP)], axis=0),
        bo=padb(b2, AP),
        n_return=n_cmd - 1, n_action=n_action, hidden_p=HP, action_p=AP,
    )


def discrete_head_forward(state, desired_return, desired_horizon, prep):
    B, n_state = state.shape
    n_return = prep["n_return"]
    HP, AP = prep["hidden_p"], prep["action_p"]
    n_action = prep["n_action"]

    TB = B if B <= 512 else 512                        # batch tile (rows / grid step)
    grid = (pl.cdiv(B, TB),)

    kernel = functools.partial(
        _discrete_head_kernel, n_return=n_return, n_action=n_action)

    out_padded = pl.pallas_call(
        kernel,
        out_shape=jax.ShapeDtypeStruct((B, AP), jnp.float32),
        grid=grid,
        in_specs=[
            pl.BlockSpec((TB, n_state), lambda i: (i, 0)),         # state
            pl.BlockSpec((TB, n_return), lambda i: (i, 0)),        # desired_return
            pl.BlockSpec((TB, 1), lambda i: (i, 0)),               # desired_horizon
            pl.BlockSpec((n_state, HP), lambda i: (0, 0)),         # Ws (VMEM-resident)
            pl.BlockSpec((n_return + 1, HP), lambda i: (0, 0)),    # Wc (scaled)
            pl.BlockSpec((HP, HP), lambda i: (0, 0)),              # W1
            pl.BlockSpec((HP, AP), lambda i: (0, 0)),              # W2
            pl.BlockSpec((3, HP), lambda i: (0, 0)),               # [bs; bc; b1]
            pl.BlockSpec((1, AP), lambda i: (0, 0)),               # b2
        ],
        out_specs=pl.BlockSpec((TB, AP), lambda i: (i, 0)),
        compiler_params=pltpu.CompilerParams(
            dimension_semantics=("parallel",)),                    # v7x: 2 TCs
    )(state, desired_return, desired_horizon,
      prep["ws"], prep["wc"], prep["w1"], prep["w2"], prep["bh"], prep["bo"])

    # Slice away the padded action lanes (kernel-internal stores stay lane-dense).
    return out_padded[:, :n_action]


def init_params(key, n_state, n_cmd, hidden, n_action):
    ks = jax.random.split(key, 8)
    def lin(kw, kb, fan_in, fan_out):
        lim = 1.0 / jnp.sqrt(fan_in)
        w = jax.random.uniform(kw, (fan_in, fan_out), jnp.float32, -lim, lim)
        b = jax.random.uniform(kb, (1, fan_out), jnp.float32, -lim, lim)
        return w, b
    ws, bs = lin(ks[0], ks[1], n_state, hidden)
    wc, bc = lin(ks[2], ks[3], n_cmd, hidden)
    w1, b1 = lin(ks[4], ks[5], hidden, hidden)
    w2, b2 = lin(ks[6], ks[7], hidden, n_action)
    return (ws, bs, wc, bc, w1, b1, w2, b2)


if __name__ == "__main__":
    key = jax.random.PRNGKey(0)
    k_state, k_ret, k_hor, k_params = jax.random.split(key, 4)

    B, n_state, n_return, hidden, n_action = 8, 32, 2, 32, 8
    n_cmd = n_return + 1  # desired_return dims + desired_horizon (1)

    state = jax.random.normal(k_state, (B, n_state), jnp.float32)
    desired_return = jax.random.normal(k_ret, (B, n_return), jnp.float32)
    desired_horizon = jax.random.uniform(k_hor, (B, 1), jnp.float32, 1.0, 50.0)
    scaling_factor = jnp.array([[0.1, 0.1, 0.01]], jnp.float32)  # (1, n_cmd)

    params = init_params(k_params, n_state, n_cmd, hidden, n_action)
    prep = prepare_params(params, scaling_factor)   # one-time: fold scale, pad, pack

    out = discrete_head_forward(state, desired_return, desired_horizon, prep)
    jax.block_until_ready(out)

    # reference check in plain JAX (original, un-padded params)
    ws, bs, wc, bc, w1, b1, w2, b2 = params
    cmd = jnp.concatenate([desired_return, desired_horizon], axis=-1) * scaling_factor
    s = jax.nn.sigmoid(state @ ws + bs)
    c = jax.nn.sigmoid(cmd @ wc + bc)
    h = jnp.maximum((s * c) @ w1 + b1, 0.0)
    ref = jax.nn.log_softmax(h @ w2 + b2, axis=1)

    assert out.shape == (B, n_action)
    assert jnp.allclose(out, ref, atol=1e-5, rtol=1e-5), "mismatch vs reference"

    print("KERNEL_OK")
</pallas_src>

<mosaic_0001>
module attributes {stable_mosaic.version = 11 : i64} {
  func.func @_discrete_head_kernel(%arg0: i32, %arg1: memref<8x32xf32, #tpu.memory_space<vmem>>, %arg2: memref<8x2xf32, #tpu.memory_space<vmem>>, %arg3: memref<8x1xf32, #tpu.memory_space<vmem>>, %arg4: memref<32x128xf32, #tpu.memory_space<vmem>>, %arg5: memref<3x128xf32, #tpu.memory_space<vmem>>, %arg6: memref<128x128xf32, #tpu.memory_space<vmem>>, %arg7: memref<128x128xf32, #tpu.memory_space<vmem>>, %arg8: memref<3x128xf32, #tpu.memory_space<vmem>>, %arg9: memref<1x128xf32, #tpu.memory_space<vmem>>, %arg10: memref<8x128xf32, #tpu.memory_space<vmem>>) attributes {dimension_semantics = [#tpu.dimension_semantics<parallel>], iteration_bounds = array<i64: 1>, scalar_prefetch = 0 : i64, scratch_operands = 0 : i64, tpu.core_type = #tpu.core_type<tc>, window_params = [{transform_indices = @transform_0, window_bounds = array<i64: 8, 32>}, {transform_indices = @transform_1, window_bounds = array<i64: 8, 2>}, {transform_indices = @transform_2, window_bounds = array<i64: 8, 1>}, {pipeline_mode = #tpu.pipeline_mode<synchronous>, transform_indices = @transform_3, window_bounds = array<i64: 32, 128>}, {pipeline_mode = #tpu.pipeline_mode<synchronous>, transform_indices = @transform_4, window_bounds = array<i64: 3, 128>}, {pipeline_mode = #tpu.pipeline_mode<synchronous>, transform_indices = @transform_5, window_bounds = array<i64: 128, 128>}, {pipeline_mode = #tpu.pipeline_mode<synchronous>, transform_indices = @transform_6, window_bounds = array<i64: 128, 128>}, {pipeline_mode = #tpu.pipeline_mode<synchronous>, transform_indices = @transform_7, window_bounds = array<i64: 3, 128>}, {pipeline_mode = #tpu.pipeline_mode<synchronous>, transform_indices = @transform_8, window_bounds = array<i64: 1, 128>}, {transform_indices = @transform_9, window_bounds = array<i64: 8, 128>}]} {
    %c0 = arith.constant 0 : index
    %c0_0 = arith.constant 0 : index
    %0 = vector.load %arg1[%c0, %c0_0] : memref<8x32xf32, #tpu.memory_space<vmem>>, vector<8x32xf32>
    %c0_1 = arith.constant 0 : index
    %c0_2 = arith.constant 0 : index
    %1 = vector.load %arg4[%c0_1, %c0_2] : memref<32x128xf32, #tpu.memory_space<vmem>>, vector<32x128xf32>
    %cst = arith.constant dense<0.000000e+00> : vector<8x128xf32>
    %2 = tpu.matmul %0, %1, %cst {dimension_numbers = #tpu.dot_dimension_numbers<[1], [0], [0], [1], [0, 0, 1, 1], [], []>} : vector<8x32xf32>, vector<32x128xf32>, vector<8x128xf32> -> vector<8x128xf32>
    %c0_3 = arith.constant 0 : index
    %c0_4 = arith.constant 0 : index
    %3 = vector.load %arg8[%c0_3, %c0_4] : memref<3x128xf32, #tpu.memory_space<vmem>>, vector<1x128xf32>
    %4 = vector.broadcast %3 : vector<1x128xf32> to vector<8x128xf32>
    %5 = arith.addf %2, %4 : vector<8x128xf32>
    %6 = arith.negf %5 : vector<8x128xf32>
    %7 = math.exp %6 : vector<8x128xf32>
    %cst_5 = arith.constant 1.000000e+00 : f32
    %8 = vector.broadcast %cst_5 : f32 to vector<8x128xf32>
    %9 = arith.addf %8, %7 : vector<8x128xf32>
    %10 = arith.divf %8, %9 : vector<8x128xf32>
    %c0_6 = arith.constant 0 : index
    %c0_7 = arith.constant 0 : index
    %11 = vector.load %arg2[%c0_6, %c0_7] : memref<8x2xf32, #tpu.memory_space<vmem>>, vector<8x2xf32>
    %c0_8 = arith.constant 0 : index
    %c0_9 = arith.constant 0 : index
    %12 = vector.load %arg3[%c0_8, %c0_9] : memref<8x1xf32, #tpu.memory_space<vmem>>, vector<8x1xf32>
    %c2 = arith.constant 2 : index
    %c0_10 = arith.constant 0 : index
    %13 = vector.load %arg5[%c2, %c0_10] : memref<3x128xf32, #tpu.memory_space<vmem>>, vector<1x128xf32>
    %14 = vector.broadcast %12 : vector<8x1xf32> to vector<8x128xf32>
    %15 = vector.broadcast %13 : vector<1x128xf32> to vector<8x128xf32>
    %16 = arith.mulf %14, %15 : vector<8x128xf32>
    %c1 = arith.constant 1 : index
    %c0_11 = arith.constant 0 : index
    %17 = vector.load %arg8[%c1, %c0_11] : memref<3x128xf32, #tpu.memory_space<vmem>>, vector<1x128xf32>
    %18 = vector.broadcast %17 : vector<1x128xf32> to vector<8x128xf32>
    %19 = arith.addf %16, %18 : vector<8x128xf32>
    %20 = vector.extract_strided_slice %11 {offsets = [0, 0], sizes = [8, 1], strides = [1, 1]} : vector<8x2xf32> to vector<8x1xf32>
    %c0_12 = arith.constant 0 : index
    %c0_13 = arith.constant 0 : index
    %21 = vector.load %arg5[%c0_12, %c0_13] : memref<3x128xf32, #tpu.memory_space<vmem>>, vector<1x128xf32>
    %22 = vector.broadcast %20 : vector<8x1xf32> to vector<8x128xf32>
    %23 = vector.broadcast %21 : vector<1x128xf32> to vector<8x128xf32>
    %24 = arith.mulf %22, %23 : vector<8x128xf32>
    %25 = arith.addf %19, %24 : vector<8x128xf32>
    %26 = vector.extract_strided_slice %11 {offsets = [0, 1], sizes = [8, 1], strides = [1, 1]} : vector<8x2xf32> to vector<8x1xf32>
    %c1_14 = arith.constant 1 : index
    %c0_15 = arith.constant 0 : index
    %27 = vector.load %arg5[%c1_14, %c0_15] : memref<3x128xf32, #tpu.memory_space<vmem>>, vector<1x128xf32>
    %28 = vector.broadcast %26 : vector<8x1xf32> to vector<8x128xf32>
    %29 = vector.broadcast %27 : vector<1x128xf32> to vector<8x128xf32>
    %30 = arith.mulf %28, %29 : vector<8x128xf32>
    %31 = arith.addf %25, %30 : vector<8x128xf32>
    %32 = arith.negf %31 : vector<8x128xf32>
    %33 = math.exp %32 : vector<8x128xf32>
    %cst_16 = arith.constant 1.000000e+00 : f32
    %34 = vector.broadcast %cst_16 : f32 to vector<8x128xf32>
    %35 = arith.addf %34, %33 : vector<8x128xf32>
    %36 = arith.divf %34, %35 : vector<8x128xf32>
    %37 = arith.mulf %10, %36 : vector<8x128xf32>
    %c0_17 = arith.constant 0 : index
    %c0_18 = arith.constant 0 : index
    %38 = vector.load %arg6[%c0_17, %c0_18] : memref<128x128xf32, #tpu.memory_space<vmem>>, vector<128x128xf32>
    %cst_19 = arith.constant dense<0.000000e+00> : vector<8x128xf32>
    %39 = tpu.matmul %37, %38, %cst_19 {dimension_numbers = #tpu.dot_dimension_numbers<[1], [0], [0], [1], [0, 0, 1, 1], [], []>} : vector<8x128xf32>, vector<128x128xf32>, vector<8x128xf32> -> vector<8x128xf32>
    %c2_20 = arith.constant 2 : index
    %c0_21 = arith.constant 0 : index
    %40 = vector.load %arg8[%c2_20, %c0_21] : memref<3x128xf32, #tpu.memory_space<vmem>>, vector<1x128xf32>
    %41 = vector.broadcast %40 : vector<1x128xf32> to vector<8x128xf32>
    %42 = arith.addf %39, %41 : vector<8x128xf32>
    %cst_22 = arith.constant 0.000000e+00 : f32
    %43 = vector.broadcast %cst_22 : f32 to vector<8x128xf32>
    %44 = arith.maximumf %42, %43 : vector<8x128xf32>
    %c0_23 = arith.constant 0 : index
    %c0_24 = arith.constant 0 : index
    %45 = vector.load %arg7[%c0_23, %c0_24] : memref<128x128xf32, #tpu.memory_space<vmem>>, vector<128x128xf32>
    %cst_25 = arith.constant dense<0.000000e+00> : vector<8x128xf32>
    %46 = tpu.matmul %44, %45, %cst_25 {dimension_numbers = #tpu.dot_dimension_numbers<[1], [0], [0], [1], [0, 0, 1, 1], [], []>} : vector<8x128xf32>, vector<128x128xf32>, vector<8x128xf32> -> vector<8x128xf32>
    %c0_26 = arith.constant 0 : index
    %c0_27 = arith.constant 0 : index
    %47 = vector.load %arg9[%c0_26, %c0_27] : memref<1x128xf32, #tpu.memory_space<vmem>>, vector<1x128xf32>
    %48 = vector.broadcast %47 : vector<1x128xf32> to vector<8x128xf32>
    %49 = arith.addf %46, %48 : vector<8x128xf32>
    %50 = tpu.iota {dimensions = array<i32: 1>} : vector<8x128xi32>
    %c8_i32 = arith.constant 8 : i32
    %51 = vector.broadcast %c8_i32 : i32 to vector<8x128xi32>
    %52 = arith.cmpi slt, %50, %51 : vector<8x128xi32>
    %cst_28 = arith.constant 0xFF800000 : f32
    %53 = vector.broadcast %cst_28 : f32 to vector<8x128xf32>
    %54 = arith.select %52, %49, %53 : vector<8x128xi1>, vector<8x128xf32>
    %cst_29 = arith.constant dense<0xFF800000> : vector<8xf32>
    %55 = vector.multi_reduction <maximumf>, %54, %cst_29 [1] : vector<8x128xf32> to vector<8xf32>
    %56 = vector.shape_cast %55 : vector<8xf32> to vector<8x1xf32>
    %57 = vector.broadcast %56 : vector<8x1xf32> to vector<8x128xf32>
    %58 = arith.subf %49, %57 : vector<8x128xf32>
    %59 = math.exp %58 : vector<8x128xf32>
    %cst_30 = arith.constant 0.000000e+00 : f32
    %60 = vector.broadcast %cst_30 : f32 to vector<8x128xf32>
    %61 = arith.select %52, %59, %60 : vector<8x128xi1>, vector<8x128xf32>
    %cst_31 = arith.constant dense<0.000000e+00> : vector<8xf32>
    %62 = vector.multi_reduction <add>, %61, %cst_31 [1] : vector<8x128xf32> to vector<8xf32>
    %63 = vector.shape_cast %62 : vector<8xf32> to vector<8x1xf32>
    %64 = math.log %63 : vector<8x1xf32>
    %65 = arith.addf %64, %56 : vector<8x1xf32>
    %66 = vector.broadcast %65 : vector<8x1xf32> to vector<8x128xf32>
    %67 = arith.subf %49, %66 : vector<8x128xf32>
    %cst_32 = arith.constant 0.000000e+00 : f32
    %68 = vector.broadcast %cst_32 : f32 to vector<8x128xf32>
    %69 = arith.select %52, %67, %68 : vector<8x128xi1>, vector<8x128xf32>
    %c0_33 = arith.constant 0 : index
    %c0_34 = arith.constant 0 : index
    %70 = vector.load %arg10[%c0_33, %c0_34] : memref<8x128xf32, #tpu.memory_space<vmem>>, vector<8x128xf32>
    tpu.vector_store %arg10[%c0_33, %c0_34], %69 {strides = array<i32>} : memref<8x128xf32, #tpu.memory_space<vmem>>, vector<8x128xf32>,
    return
  }
  func.func @transform_0(%arg0: i32) -> (i32, i32) {
    %c0_i32 = arith.constant 0 : i32
    %c0_i32_0 = arith.constant 0 : i32
    return %arg0, %c0_i32 : i32, i32
  }
  func.func @transform_1(%arg0: i32) -> (i32, i32) {
    %c0_i32 = arith.constant 0 : i32
    %c0_i32_0 = arith.constant 0 : i32
    return %arg0, %c0_i32 : i32, i32
  }
  func.func @transform_2(%arg0: i32) -> (i32, i32) {
    %c0_i32 = arith.constant 0 : i32
    %c0_i32_0 = arith.constant 0 : i32
    return %arg0, %c0_i32 : i32, i32
  }
  func.func @transform_3(%arg0: i32) -> (i32, i32) {
    %c0_i32 = arith.constant 0 : i32
    %c0_i32_0 = arith.constant 0 : i32
    %c0_i32_1 = arith.constant 0 : i32
    return %c0_i32, %c0_i32_0 : i32, i32
  }
  func.func @transform_4(%arg0: i32) -> (i32, i32) {
    %c0_i32 = arith.constant 0 : i32
    %c0_i32_0 = arith.constant 0 : i32
    %c0_i32_1 = arith.constant 0 : i32
    return %c0_i32, %c0_i32_0 : i32, i32
  }
  func.func @transform_5(%arg0: i32) -> (i32, i32) {
    %c0_i32 = arith.constant 0 : i32
    %c0_i32_0 = arith.constant 0 : i32
    %c0_i32_1 = arith.constant 0 : i32
    return %c0_i32, %c0_i32_0 : i32, i32
  }
  func.func @transform_6(%arg0: i32) -> (i32, i32) {
    %c0_i32 = arith.constant 0 : i32
    %c0_i32_0 = arith.constant 0 : i32
    %c0_i32_1 = arith.constant 0 : i32
    return %c0_i32, %c0_i32_0 : i32, i32
  }
  func.func @transform_7(%arg0: i32) -> (i32, i32) {
    %c0_i32 = arith.constant 0 : i32
    %c0_i32_0 = arith.constant 0 : i32
    %c0_i32_1 = arith.constant 0 : i32
    return %c0_i32, %c0_i32_0 : i32, i32
  }
  func.func @transform_8(%arg0: i32) -> (i32, i32) {
    %c0_i32 = arith.constant 0 : i32
    %c0_i32_0 = arith.constant 0 : i32
    %c0_i32_1 = arith.constant 0 : i32
    return %c0_i32, %c0_i32_0 : i32, i32
  }
  func.func @transform_9(%arg0: i32) -> (i32, i32) {
    %c0_i32 = arith.constant 0 : i32
    %c0_i32_0 = arith.constant 0 : i32
    return %arg0, %c0_i32 : i32, i32
  }
}

</mosaic_0001>

<llo_original>
// kernel: tpu_custom_call.1
$region0: #{tpu_custom_call.1}
  #allocation0 [shape = 'u32[]', space=smem, size = 0x4, offset = 0x4, fixed_abs, tag = 'smem constant byte address 0x4 - core index']
  #allocation1 [shape = 'u32[144,128]{1,0:T(1,128)}', space=vmem, size = 0x12000, scoped, tag = 'internal scratch']
  %s0 = inlined_call_operand.vmem [shape: f32[8,32], index: 0, kind: input, shape index: {}]
  %s1 = inlined_call_operand.vmem [shape: f32[8,2], index: 1, kind: input, shape index: {}]
  %s2 = inlined_call_operand.vmem [shape: f32[8,1], index: 2, kind: input, shape index: {}]
  %s3 = inlined_call_operand.hbm [shape: f32[32,128], index: 3, kind: input, shape index: {}]
  %s4 = inlined_call_operand.vmem [shape: f32[3,128], index: 4, kind: input, shape index: {}]
  %s5 = inlined_call_operand.hbm [shape: f32[128,128], index: 5, kind: input, shape index: {}]
  %s6 = inlined_call_operand.hbm [shape: f32[128,128], index: 6, kind: input, shape index: {}]
  %s7 = inlined_call_operand.vmem [shape: f32[3,128], index: 7, kind: input, shape index: {}]
  %s8 = inlined_call_operand.vmem [shape: f32[1,128], index: 8, kind: input, shape index: {}]
  %s9 = inlined_call_operand.hbm [shape: f32[8,128], index: 9, kind: output, shape index: {}]
  %s10 = sld [smem:[#allocation0]]
  $region58: #{tpu_custom_call.1} parent=0
    _
  %s12 = ssub.s32 1, %s10
  %s13 = scalar_select 0, %s12, %s10
  $region1: #{tpu_custom_call.1} parent=0
    #allocation2 [shape = 'u8[16384]{0}', space=vmem, size = 0x4000, scoped, tag = 'input window, operand 3, single buffered']
    #allocation3 [shape = 's32[1]{0}', space=sflag, size = 0x4, scoped, tag = 'scoped memory for tpu_custom_call.1']
    #allocation4 [shape = 's32[1]{0}', space=sflag, size = 0x4, scoped, tag = 'scoped memory for tpu_custom_call.1']
    #allocation5 [shape = 'u8[65536]{0}', space=vmem, size = 0x10000, scoped, tag = 'input window, operand 5, single buffered']
    #allocation6 [shape = 's32[1]{0}', space=sflag, size = 0x4, scoped, tag = 'scoped memory for tpu_custom_call.1']
    #allocation7 [shape = 'u8[65536]{0}', space=vmem, size = 0x10000, scoped, tag = 'input window, operand 6, single buffered']
    #allocation8 [shape = 'u8[4096]{0}', space=vmem, size = 0x1000, scoped, tag = 'output window, operand 0, single buffered']
    %14 = vsyncpa [#allocation3], 0
    %15 = vsyncpa [#allocation6], 0
    %16 = vsyncpa [#allocation4], 0
    // Predicated region
    $region2: #{tpu_custom_call.1} parent=1 // pred_check
      _
    $region3: #{tpu_custom_call.1} parent=1 // pred_check_branch
      %18 = sbr.rel (0) target = $region5
    $region4: #{tpu_custom_call.1} parent=1 // pred_region
      _
    $region5: #{tpu_custom_call.1} parent=1 // pred_fallthru
      _
    // Predicated region
    $region6: #{tpu_custom_call.1} parent=1 // pred_check
      _
    $region7: #{tpu_custom_call.1} parent=1 // pred_check_branch
      %20 = sbr.rel (0) target = $region9
    $region8: #{tpu_custom_call.1} parent=1 // pred_region
      _
    $region9: #{tpu_custom_call.1} parent=1 // pred_fallthru
      _
    // Predicated region
    $region10: #{tpu_custom_call.1} parent=1 // pred_check
      _
    $region11: #{tpu_custom_call.1} parent=1 // pred_check_branch
      %22 = sbr.rel (0) target = $region13
    $region12: #{tpu_custom_call.1} parent=1 // pred_region
      _
    $region13: #{tpu_custom_call.1} parent=1 // pred_fallthru
      _
    // Predicated region
    $region14: #{tpu_custom_call.1} parent=1 // pred_check
      _
    $region15: #{tpu_custom_call.1} parent=1 // pred_check_branch
      %24 = sbr.rel (0) target = $region17
    $region16: #{tpu_custom_call.1} parent=1 // pred_region
      %s26 = ssub.s32 512, 512
      %27 = vsyncadd [#allocation3], %s26
      %s28 = sshll.u32 [#allocation2], 4
      %s29 = int_to_ptr.vmem [resolvable:$true] %s28
      %34 = dma.hbm_to_vmem [thread:$0]  %s3, 512, %s29, [#allocation3], 128, 128, 8
    $region17: #{tpu_custom_call.1} parent=1 // pred_fallthru
      _
    // Predicated region
    $region18: #{tpu_custom_call.1} parent=1 // pred_check
      _
    $region19: #{tpu_custom_call.1} parent=1 // pred_check_branch
      %36 = sbr.rel (0) target = $region21
    $region20: #{tpu_custom_call.1} parent=1 // pred_region
      _
    $region21: #{tpu_custom_call.1} parent=1 // pred_fallthru
      _
    // Predicated region
    $region22: #{tpu_custom_call.1} parent=1 // pred_check
      _
    $region23: #{tpu_custom_call.1} parent=1 // pred_check_branch
      %38 = sbr.rel (0) target = $region25
    $region24: #{tpu_custom_call.1} parent=1 // pred_region
      %s40 = ssub.s32 2048, 2048
      %41 = vsyncadd [#allocation6], %s40
      %s42 = sshll.u32 [#allocation5], 4
      %s43 = int_to_ptr.vmem [resolvable:$true] %s42
      %48 = dma.hbm_to_vmem [thread:$0]  %s5, 2048, %s43, [#allocation6], 128, 128, 8
    $region25: #{tpu_custom_call.1} parent=1 // pred_fallthru
      _
    // Predicated region
    $region26: #{tpu_custom_call.1} parent=1 // pred_check
      _
    $region27: #{tpu_custom_call.1} parent=1 // pred_check_branch
      %50 = sbr.rel (0) target = $region29
    $region28: #{tpu_custom_call.1} parent=1 // pred_region
      %s52 = ssub.s32 2048, 2048
      %53 = vsyncadd [#allocation6], %s52
      %s54 = sshll.u32 [#allocation7], 4
      %s55 = int_to_ptr.vmem [resolvable:$true] %s54
      %60 = dma.hbm_to_vmem [thread:$0]  %s6, 2048, %s55, [#allocation6], 128, 128, 8
    $region29: #{tpu_custom_call.1} parent=1 // pred_fallthru
      _
    // Predicated region
    $region30: #{tpu_custom_call.1} parent=1 // pred_check
      _
    $region31: #{tpu_custom_call.1} parent=1 // pred_check_branch
      %62 = sbr.rel (0) target = $region33
    $region32: #{tpu_custom_call.1} parent=1 // pred_region
      _
    $region33: #{tpu_custom_call.1} parent=1 // pred_fallthru
      _
    // Predicated region
    $region34: #{tpu_custom_call.1} parent=1 // pred_check
      _
    $region35: #{tpu_custom_call.1} parent=1 // pred_check_branch
      %64 = sbr.rel (0) target = $region37
    $region36: #{tpu_custom_call.1} parent=1 // pred_region
      _
    $region37: #{tpu_custom_call.1} parent=1 // pred_fallthru
      _
    // Predicated region
    $region38: #{tpu_custom_call.1} parent=1 // pred_check
      _
    $region39: #{tpu_custom_call.1} parent=1 // pred_check_branch
      %66 = sbr.rel (0) target = $region41
    $region40: #{tpu_custom_call.1} parent=1 // pred_region
      %67 = dma.done [#allocation3], 512
    $region41: #{tpu_custom_call.1} parent=1 // pred_fallthru
      _
    // Predicated region
    $region42: #{tpu_custom_call.1} parent=1 // pred_check
      _
    $region43: #{tpu_custom_call.1} parent=1 // pred_check_branch
      %69 = sbr.rel (0) target = $region45
    $region44: #{tpu_custom_call.1} parent=1 // pred_region
      %70 = dma.done [#allocation6], 2048
    $region45: #{tpu_custom_call.1} parent=1 // pred_fallthru
      _
    // Predicated region
    $region46: #{tpu_custom_call.1} parent=1 // pred_check
      _
    $region47: #{tpu_custom_call.1} parent=1 // pred_check_branch
      %72 = sbr.rel (0) target = $region49
    $region48: #{tpu_custom_call.1} parent=1 // pred_region
      %73 = dma.done [#allocation6], 2048
    $region49: #{tpu_custom_call.1} parent=1 // pred_fallthru
      _
    %v74 = vld [vmem:[%s0] sm:$0xff]
    %v75 = vld [vmem:[#allocation2] sm:$0xff]
    %v76 = vld [vmem:[#allocation2 + $0x8] sm:$0xff]
    %v77 = vld [vmem:[#allocation2 + $0x10] sm:$0xff]
    %v78 = vld [vmem:[#allocation2 + $0x18] sm:$0xff]
    %v79 = vld [vmem:[%s7] sm:$0x1]
    %v80 = vlaneseq
    %v81 = vshrl.u32 %v80, 7
    %v82 = vsub.s32 0, %v81
    %v83 = vrot.slane %v79, %v82
    %vm84 = vcmask 261120
    %v86 = vsel %vm84, %v74, 0
    %88 = vmatprep.subr.mxu0 0.0
    %89 = vmatpush1.msra.mxu0 0.0
    %90 = vmatprep.subr.mxu0 0.0
    %91 = vmatpush1.msra.mxu0 0.0
    %92 = vmatprep.subr.mxu0 0.0
    %93 = vmatpush1.msra.mxu0 0.0
    %94 = vmatprep.subr.mxu0 0.0
    %95 = vmatpush1.msra.mxu0 0.0
    %96 = vmatprep.subr.mxu0 0.0
    %97 = vmatpush1.msra.mxu0 0.0
    %98 = vmatprep.subr.mxu0 0.0
    %99 = vmatpush1.msra.mxu0 0.0
    %100 = vmatprep.subr.mxu0 0.0
    %101 = vmatpush1.msra.mxu0 0.0
    %102 = vmatprep.subr.mxu0 0.0
    %103 = vmatpush1.msra.mxu0 0.0
    %104 = vmatprep.subr.mxu0 0.0
    %105 = vmatpush1.msra.mxu0 0.0
    %106 = vmatprep.subr.mxu0 0.0
    %107 = vmatpush1.msra.mxu0 0.0
    %108 = vmatprep.subr.mxu0 0.0
    %109 = vmatpush1.msra.mxu0 0.0
    %110 = vmatprep.subr.mxu0 0.0
    %111 = vmatpush1.msra.mxu0 0.0
    %112 = vmatprep.subr.mxu0 0.0
    %113 = vmatpush1.msra.mxu0 %v78
    %114 = vmatprep.subr.mxu0 0.0
    %115 = vmatpush1.msra.mxu0 %v77
    %116 = vmatprep.subr.mxu0 0.0
    %117 = vmatpush1.msra.mxu0 %v76
    %118 = vmatprep.subr.mxu0 0.0
    %119 = vmatpush1.msra.mxu0 %v75
    %120 = vmatprep.subr.mxu0 0.0
    %121 = vmatpush2.msra.mxu0 0.0
    %122 = vmatprep.subr.mxu0 0.0
    %123 = vmatpush2.msra.mxu0 0.0
    %124 = vmatprep.subr.mxu0 0.0
    %125 = vmatpush2.msra.mxu0 0.0
    %126 = vmatprep.subr.mxu0 0.0
    %127 = vmatpush2.msra.mxu0 0.0
    %128 = vmatprep.subr.mxu0 0.0
    %129 = vmatpush2.msra.mxu0 0.0
    %130 = vmatprep.subr.mxu0 0.0
    %131 = vmatpush2.msra.mxu0 0.0
    %132 = vmatprep.subr.mxu0 0.0
    %133 = vmatpush2.msra.mxu0 0.0
    %134 = vmatprep.subr.mxu0 0.0
    %135 = vmatpush2.msra.mxu0 0.0
    %136 = vmatprep.subr.mxu0 0.0
    %137 = vmatpush2.msra.mxu0 0.0
    %138 = vmatprep.subr.mxu0 0.0
    %139 = vmatpush2.msra.mxu0 0.0
    %140 = vmatprep.subr.mxu0 0.0
    %141 = vmatpush2.msra.mxu0 0.0
    %142 = vmatprep.subr.mxu0 0.0
    %143 = vmatpush2.msra.mxu0 0.0
    %144 = vmatprep.subr.mxu0 0.0
    %145 = vmatpush2.msra.mxu0 0.0
    %146 = vmatprep.subr.mxu0 0.0
    %147 = vmatpush2.msra.mxu0 0.0
    %148 = vmatprep.subr.mxu0 0.0
    %149 = vmatpush2.msra.mxu0 0.0
    %150 = vmatprep.subr.mxu0 0.0
    %151 = vmatpush2.msra.mxu0 0.0
    %152 = vmatprep.mubr.f32.mxu0 0.0
    %153 = vmatmul.mubr.f32.gmra.mxu0 %v86
    %v154 = vpop.f32.mrf.mxu0
    %v155 = vadd.f32 %v83, %v154
    %v156 = vpop.f32.mrf.mxu0
    %157 = vdwg.mxu0
    %v158 = vxor.u32 %v155, 2147483648
    %v159 = vmul.f32 %v158, 1.442695
    %v160 = vpow.pop %v159
    %v161 = vadd.f32 %v160, 1.0
    %v162 = vrcp.pop %v161
    %v163 = vmul.f32 1.0, %v162
    %v164 = vld [vmem:[%s1] sm:$0xff]
    %v165 = vld [vmem:[%s2] sm:$0xff]
    %v166 = vld [vmem:[%s4 + $0x2] sm:$0x1]
    %168 = vset.pattern.permute.xlu0 0
    %169 = vperm.xlu0 %168, %v165
    %v170 = vpop.permute.xlu0 %169
    %v172 = vlaneseq
    %v173 = vshrl.u32 %v172, 7
    %v174 = vsub.s32 0, %v173
    %v175 = vrot.slane %v166, %v174
    %v176 = vmul.f32 %v170, %v175
    %v177 = vld [vmem:[%s7 + $0x1] sm:$0x1]
    %v178 = vlaneseq
    %v179 = vshrl.u32 %v178, 7
    %v180 = vsub.s32 0, %v179
    %v181 = vrot.slane %v177, %v180
    %v182 = vadd.f32 %v176, %v181
    %v183 = vld [vmem:[%s4] sm:$0x1]
    %185 = vset.pattern.permute.xlu0 0
    %186 = vperm.xlu0 %185, %v164
    %v187 = vpop.permute.xlu0 %186
    %v189 = vlaneseq
    %v190 = vshrl.u32 %v189, 7
    %v191 = vsub.s32 0, %v190
    %v192 = vrot.slane %v183, %v191
    %v193 = vmul.f32 %v187, %v192
    %v194 = vadd.f32 %v182, %v193
    %v195 = vld [vmem:[%s4 + $0x1] sm:$0x1]
    %196 = vset.pattern.permute.xlu0 1
    %197 = vperm.xlu0 %196, %v164
    %v198 = vpop.permute.xlu0 %197
    %v200 = vlaneseq
    %v201 = vshrl.u32 %v200, 7
    %v202 = vsub.s32 0, %v201
    %v203 = vrot.slane %v195, %v202
    %v204 = vmul.f32 %v198, %v203
    %v205 = vadd.f32 %v194, %v204
    %v206 = vxor.u32 %v205, 2147483648
    %v207 = vmul.f32 %v206, 1.442695
    %v208 = vpow.pop %v207
    %v209 = vadd.f32 %v208, 1.0
    %v210 = vrcp.pop %v209
    %v211 = vmul.f32 1.0, %v210
    %v212 = vmul.f32 %v163, %v211
    %v213 = vld [vmem:[#allocation5] sm:$0xff]
    %v214 = vld [vmem:[#allocation5 + $0x8] sm:$0xff]
    %v215 = vld [vmem:[#allocation5 + $0x10] sm:$0xff]
    %v216 = vld [vmem:[#allocation5 + $0x18] sm:$0xff]
    %v217 = vld [vmem:[#allocation5 + $0x20] sm:$0xff]
    %v218 = vld [vmem:[#allocation5 + $0x28] sm:$0xff]
    %v219 = vld [vmem:[#allocation5 + $0x30] sm:$0xff]
    %v220 = vld [vmem:[#allocation5 + $0x38] sm:$0xff]
    %v221 = vld [vmem:[#allocation5 + $0x40] sm:$0xff]
    %v222 = vld [vmem:[#allocation5 + $0x48] sm:$0xff]
    %v223 = vld [vmem:[#allocation5 + $0x50] sm:$0xff]
    %v224 = vld [vmem:[#allocation5 + $0x58] sm:$0xff]
    %v225 = vld [vmem:[#allocation5 + $0x60] sm:$0xff]
    %v226 = vld [vmem:[#allocation5 + $0x68] sm:$0xff]
    %v227 = vld [vmem:[#allocation5 + $0x70] sm:$0xff]
    %v228 = vld [vmem:[#allocation5 + $0x78] sm:$0xff]
    %v229 = vld [vmem:[%s7 + $0x2] sm:$0x1]
    %v230 = vlaneseq
    %v231 = vshrl.u32 %v230, 7
    %v232 = vsub.s32 0, %v231
    %v233 = vrot.slane %v229, %v232
    %234 = vmatprep.subr.mxu0 0.0
    %235 = vmatpush1.msra.mxu0 %v228
    %236 = vmatprep.subr.mxu0 0.0
    %237 = vmatpush1.msra.mxu0 %v227
    %238 = vmatprep.subr.mxu0 0.0
    %239 = vmatpush1.msra.mxu0 %v226
    %240 = vmatprep.subr.mxu0 0.0
    %241 = vmatpush1.msra.mxu0 %v225
    %242 = vmatprep.subr.mxu0 0.0
    %243 = vmatpush1.msra.mxu0 %v224
    %244 = vmatprep.subr.mxu0 0.0
    %245 = vmatpush1.msra.mxu0 %v223
    %246 = vmatprep.subr.mxu0 0.0
    %247 = vmatpush1.msra.mxu0 %v222
    %248 = vmatprep.subr.mxu0 0.0
    %249 = vmatpush1.msra.mxu0 %v221
    %250 = vmatprep.subr.mxu0 0.0
    %251 = vmatpush1.msra.mxu0 %v220
    %252 = vmatprep.subr.mxu0 0.0
    %253 = vmatpush1.msra.mxu0 %v219
    %254 = vmatprep.subr.mxu0 0.0
    %255 = vmatpush1.msra.mxu0 %v218
    %256 = vmatprep.subr.mxu0 0.0
    %257 = vmatpush1.msra.mxu0 %v217
    %258 = vmatprep.subr.mxu0 0.0
    %259 = vmatpush1.msra.mxu0 %v216
    %260 = vmatprep.subr.mxu0 0.0
    %261 = vmatpush1.msra.mxu0 %v215
    %262 = vmatprep.subr.mxu0 0.0
    %263 = vmatpush1.msra.mxu0 %v214
    %264 = vmatprep.subr.mxu0 0.0
    %265 = vmatpush1.msra.mxu0 %v213
    %266 = vmatprep.subr.mxu0 0.0
    %267 = vmatpush2.msra.mxu0 0.0
    %268 = vmatprep.subr.mxu0 0.0
    %269 = vmatpush2.msra.mxu0 0.0
    %270 = vmatprep.subr.mxu0 0.0
    %271 = vmatpush2.msra.mxu0 0.0
    %272 = vmatprep.subr.mxu0 0.0
    %273 = vmatpush2.msra.mxu0 0.0
    %274 = vmatprep.subr.mxu0 0.0
    %275 = vmatpush2.msra.mxu0 0.0
    %276 = vmatprep.subr.mxu0 0.0
    %277 = vmatpush2.msra.mxu0 0.0
    %278 = vmatprep.subr.mxu0 0.0
    %279 = vmatpush2.msra.mxu0 0.0
    %280 = vmatprep.subr.mxu0 0.0
    %281 = vmatpush2.msra.mxu0 0.0
    %282 = vmatprep.subr.mxu0 0.0
    %283 = vmatpush2.msra.mxu0 0.0
    %284 = vmatprep.subr.mxu0 0.0
    %285 = vmatpush2.msra.mxu0 0.0
    %286 = vmatprep.subr.mxu0 0.0
    %287 = vmatpush2.msra.mxu0 0.0
    %288 = vmatprep.subr.mxu0 0.0
    %289 = vmatpush2.msra.mxu0 0.0
    %290 = vmatprep.subr.mxu0 0.0
    %291 = vmatpush2.msra.mxu0 0.0
    %292 = vmatprep.subr.mxu0 0.0
    %293 = vmatpush2.msra.mxu0 0.0
    %294 = vmatprep.subr.mxu0 0.0
    %295 = vmatpush2.msra.mxu0 0.0
    %296 = vmatprep.subr.mxu0 0.0
    %297 = vmatpush2.msra.mxu0 0.0
    %298 = vmatprep.mubr.f32.mxu0 0.0
    %299 = vmatmul.mubr.f32.gmra.mxu0 %v212
    %v300 = vpop.f32.mrf.mxu0
    %v301 = vadd.f32 %v233, %v300
    %v302 = vpop.f32.mrf.mxu0
    %303 = vdwg.mxu0
    %v304 = vmax.f32 %v301, 0.0
    %v305 = vld [vmem:[#allocation7] sm:$0xff]
    %v306 = vld [vmem:[#allocation7 + $0x8] sm:$0xff]
    %v307 = vld [vmem:[#allocation7 + $0x10] sm:$0xff]
    %v308 = vld [vmem:[#allocation7 + $0x18] sm:$0xff]
    %v309 = vld [vmem:[#allocation7 + $0x20] sm:$0xff]
    %v310 = vld [vmem:[#allocation7 + $0x28] sm:$0xff]
    %v311 = vld [vmem:[#allocation7 + $0x30] sm:$0xff]
    %v312 = vld [vmem:[#allocation7 + $0x38] sm:$0xff]
    %v313 = vld [vmem:[#allocation7 + $0x40] sm:$0xff]
    %v314 = vld [vmem:[#allocation7 + $0x48] sm:$0xff]
    %v315 = vld [vmem:[#allocation7 + $0x50] sm:$0xff]
    %v316 = vld [vmem:[#allocation7 + $0x58] sm:$0xff]
    %v317 = vld [vmem:[#allocation7 + $0x60] sm:$0xff]
    %v318 = vld [vmem:[#allocation7 + $0x68] sm:$0xff]
    %v319 = vld [vmem:[#allocation7 + $0x70] sm:$0xff]
    %v320 = vld [vmem:[#allocation7 + $0x78] sm:$0xff]
    %v321 = vld [vmem:[%s8] sm:$0x1]
    %v323 = vlaneseq
    %v324 = vshrl.u32 %v323, 7
    %v325 = vsub.s32 0, %v324
    %v326 = vrot.slane %v321, %v325
    %328 = vmatprep.subr.mxu0 0.0
    %329 = vmatpush1.msra.mxu0 %v320
    %330 = vmatprep.subr.mxu0 0.0
    %331 = vmatpush1.msra.mxu0 %v319
    %332 = vmatprep.subr.mxu0 0.0
    %333 = vmatpush1.msra.mxu0 %v318
    %334 = vmatprep.subr.mxu0 0.0
    %335 = vmatpush1.msra.mxu0 %v317
    %336 = vmatprep.subr.mxu0 0.0
    %337 = vmatpush1.msra.mxu0 %v316
    %338 = vmatprep.subr.mxu0 0.0
    %339 = vmatpush1.msra.mxu0 %v315
    %340 = vmatprep.subr.mxu0 0.0
    %341 = vmatpush1.msra.mxu0 %v314
    %342 = vmatprep.subr.mxu0 0.0
    %343 = vmatpush1.msra.mxu0 %v313
    %344 = vmatprep.subr.mxu0 0.0
    %345 = vmatpush1.msra.mxu0 %v312
    %346 = vmatprep.subr.mxu0 0.0
    %347 = vmatpush1.msra.mxu0 %v311
    %348 = vmatprep.subr.mxu0 0.0
    %349 = vmatpush1.msra.mxu0 %v310
    %350 = vmatprep.subr.mxu0 0.0
    %351 = vmatpush1.msra.mxu0 %v309
    %352 = vmatprep.subr.mxu0 0.0
    %353 = vmatpush1.msra.mxu0 %v308
    %354 = vmatprep.subr.mxu0 0.0
    %355 = vmatpush1.msra.mxu0 %v307
    %356 = vmatprep.subr.mxu0 0.0
    %357 = vmatpush1.msra.mxu0 %v306
    %358 = vmatprep.subr.mxu0 0.0
    %359 = vmatpush1.msra.mxu0 %v305
    %360 = vmatprep.subr.mxu0 0.0
    %361 = vmatpush2.msra.mxu0 0.0
    %362 = vmatprep.subr.mxu0 0.0
    %363 = vmatpush2.msra.mxu0 0.0
    %364 = vmatprep.subr.mxu0 0.0
    %365 = vmatpush2.msra.mxu0 0.0
    %366 = vmatprep.subr.mxu0 0.0
    %367 = vmatpush2.msra.mxu0 0.0
    %368 = vmatprep.subr.mxu0 0.0
    %369 = vmatpush2.msra.mxu0 0.0
    %370 = vmatprep.subr.mxu0 0.0
    %371 = vmatpush2.msra.mxu0 0.0
    %372 = vmatprep.subr.mxu0 0.0
    %373 = vmatpush2.msra.mxu0 0.0
    %374 = vmatprep.subr.mxu0 0.0
    %375 = vmatpush2.msra.mxu0 0.0
    %376 = vmatprep.subr.mxu0 0.0
    %377 = vmatpush2.msra.mxu0 0.0
    %378 = vmatprep.subr.mxu0 0.0
    %379 = vmatpush2.msra.mxu0 0.0
    %380 = vmatprep.subr.mxu0 0.0
    %381 = vmatpush2.msra.mxu0 0.0
    %382 = vmatprep.subr.mxu0 0.0
    %383 = vmatpush2.msra.mxu0 0.0
    %384 = vmatprep.subr.mxu0 0.0
    %385 = vmatpush2.msra.mxu0 0.0
    %386 = vmatprep.subr.mxu0 0.0
    %387 = vmatpush2.msra.mxu0 0.0
    %388 = vmatprep.subr.mxu0 0.0
    %389 = vmatpush2.msra.mxu0 0.0
    %390 = vmatprep.subr.mxu0 0.0
    %391 = vmatpush2.msra.mxu0 0.0
    %392 = vmatprep.mubr.f32.mxu0 0.0
    %393 = vmatmul.mubr.f32.gmra.mxu0 %v304
    %v394 = vpop.f32.mrf.mxu0
    %v395 = vadd.f32 %v326, %v394
    %v396 = vpop.f32.mrf.mxu0
    %397 = vdwg.mxu0
    %v398 = vlaneseq
    %v399 = vand.u32 %v398, 127
    %vm400 = vcmp.lt.s32.totalorder %v399, 8
    %v401 = vsel %vm400, %v395, -inf
    %402 = vmax.xlane.f32.xlu0 %v401
    %v403 = vpop.xlane.xlu0 %402
    %v404 = vsub.f32 %v395, %v403
    %v405 = vmul.f32 %v404, 1.442695
    %v406 = vpow.pop %v405
    %v407 = vsel %vm400, %v406, 0.0
    %408 = vadd.xlane.f32.xlu0 %v407
    %v409 = vpop.xlane.xlu0 %408
    %v410 = vlog2.pop %v409
    %v411 = vmul.f32 %v410, 0.6931472
    %v412 = vadd.f32 %v411, %v403
    %v413 = vsub.f32 %v395, %v412
    %v414 = vsel %vm400, %v413, 0.0
    %415 = vst [vmem:[#allocation8] sm:$0xff] %v414
    // Predicated region
    $region50: #{tpu_custom_call.1} parent=1 // pred_check
      _
    $region51: #{tpu_custom_call.1} parent=1 // pred_check_branch
      %417 = sbr.rel (0) target = $region53
    $region52: #{tpu_custom_call.1} parent=1 // pred_region
      %s419 = ssub.s32 128, 128
      %420 = vsyncadd [#allocation4], %s419
      %s422 = sshll.u32 [#allocation8], 4
      %s423 = int_to_ptr.vmem [resolvable:$true] %s422
      %425 = dma.vmem_to_hbm [thread:$0]  %s423, 128, %s9, [#allocation4]
    $region53: #{tpu_custom_call.1} parent=1 // pred_fallthru
      _
    // Predicated region
    $region54: #{tpu_custom_call.1} parent=1 // pred_check
      _
    $region55: #{tpu_custom_call.1} parent=1 // pred_check_branch
      %427 = sbr.rel (0) target = $region57
    $region56: #{tpu_custom_call.1} parent=1 // pred_region
      %428 = dma.done [#allocation4], 128
    $region57: #{tpu_custom_call.1} parent=1 // pred_fallthru
      _
    %429 = vsyncpa [#allocation3], 1
    %430 = vsyncpa [#allocation6], 1
    %431 = vsyncpa [#allocation4], 1

</llo_original>
